<compile_context>
chip_gen: v5e
topology: v5e:2x2
jax: 0.10.0
libtpu: 0.0.40
codegen_flags: <defaults>
</compile_context>

<pallas_src>
import functools

import jax
import jax.numpy as jnp
from jax.experimental import pallas as pl
from jax.experimental.pallas import tpu as pltpu

IN_DIM = 18
HID_DIM = 64
OUT_DIM = 4


def mlp_kernel(x_ref, w1_ref, b1_ref, w2_ref, b2_ref, w3_ref, b3_ref, o_ref):
    # x_ref: (18, TB) bf16 ; weights: (out, in) bf16 ; biases: (out, 1) f32
    x = x_ref[...]

    # fc1 + ReLU   (MXU: bf16 x bf16 -> f32 accumulate)
    h1 = jnp.dot(w1_ref[...], x, preferred_element_type=jnp.float32)   # (64, TB)
    h1 = jnp.maximum(h1 + b1_ref[...], 0.0)                            # f32 elementwise

    # fc2 + ReLU
    h2 = jnp.dot(w2_ref[...], h1.astype(w2_ref.dtype),
                 preferred_element_type=jnp.float32)                   # (64, TB)
    h2 = jnp.maximum(h2 + b2_ref[...], 0.0)

    # fc3 (no activation)
    out = jnp.dot(w3_ref[...], h2.astype(w3_ref.dtype),
                  preferred_element_type=jnp.float32)                  # (4, TB)
    o_ref[...] = (out + b3_ref[...]).astype(o_ref.dtype)


@functools.partial(jax.jit, static_argnames=("tile_b",))
def neural_network_forward(x, params, *, tile_b=256):
    """x: (B, 18) float32.  Returns (B, 4) float32.

    params: dict with
      w1 (64, 18), w2 (64, 64), w3 (4, 64)  -- bf16, PyTorch (out, in) layout
      b1 (64, 1),  b2 (64, 1),  b3 (4, 1)   -- f32
    """
    B = x.shape[0]
    w1, b1 = params["w1"], params["b1"]
    w2, b2 = params["w2"], params["b2"]
    w3, b3 = params["w3"], params["b3"]

    # Pad batch to a multiple of the lane tile and go feature-major: (18, B_pad).
    n_tiles = pl.cdiv(B, tile_b)
    b_pad = n_tiles * tile_b
    x_t = jnp.transpose(x).astype(jnp.bfloat16)                # (18, B)
    x_t = jnp.pad(x_t, ((0, 0), (0, b_pad - B)))               # (18, B_pad)

    batch_spec = lambda rows: pl.BlockSpec((rows, tile_b), lambda i: (0, i))
    const_spec = lambda shape: pl.BlockSpec(shape, lambda i: (0, 0))

    out_t = pl.pallas_call(
        mlp_kernel,
        out_shape=jax.ShapeDtypeStruct((OUT_DIM, b_pad), jnp.float32),
        grid=(n_tiles,),
        in_specs=[
            batch_spec(IN_DIM),          # x tile  (18, TB), pipelined over batch
            const_spec(w1.shape), const_spec(b1.shape),   # weights/biases resident
            const_spec(w2.shape), const_spec(b2.shape),
            const_spec(w3.shape), const_spec(b3.shape),
        ],
        out_specs=batch_spec(OUT_DIM),   # out tile (4, TB), lane-dense store
        compiler_params=pltpu.CompilerParams(
            dimension_semantics=("parallel",),   # shard batch tiles across TCs (v7x)
        ),
    )(x_t, w1, b1, w2, b2, w3, b3)

    return jnp.transpose(out_t[:, :B])   # (B, 4)


def init_params(key):
    """Deterministic init matching PyTorch layer shapes (W: (out, in))."""
    k1, k2, k3, k4, k5, k6 = jax.random.split(key, 6)

    def uniform_init(k, shape, fan_in, dtype):
        bound = 1.0 / jnp.sqrt(fan_in)
        return jax.random.uniform(k, shape, jnp.float32, -bound, bound).astype(dtype)

    return {
        "w1": uniform_init(k1, (HID_DIM, IN_DIM), IN_DIM, jnp.bfloat16),
        "b1": uniform_init(k2, (HID_DIM, 1), IN_DIM, jnp.float32),
        "w2": uniform_init(k3, (HID_DIM, HID_DIM), HID_DIM, jnp.bfloat16),
        "b2": uniform_init(k4, (HID_DIM, 1), HID_DIM, jnp.float32),
        "w3": uniform_init(k5, (OUT_DIM, HID_DIM), HID_DIM, jnp.bfloat16),
        "b3": uniform_init(k6, (OUT_DIM, 1), HID_DIM, jnp.float32),
    }


def reference_forward(x, p):
    """Pure-JAX reference mimicking the kernel's bf16 quantization points."""
    w1 = p["w1"].astype(jnp.float32)
    w2 = p["w2"].astype(jnp.float32)
    w3 = p["w3"].astype(jnp.float32)
    xq = x.astype(jnp.bfloat16).astype(jnp.float32)
    h1 = jnp.maximum(xq @ w1.T + p["b1"].T, 0.0)
    h1 = h1.astype(jnp.bfloat16).astype(jnp.float32)
    h2 = jnp.maximum(h1 @ w2.T + p["b2"].T, 0.0)
    h2 = h2.astype(jnp.bfloat16).astype(jnp.float32)
    return h2 @ w3.T + p["b3"].T


if __name__ == "__main__":
    key = jax.random.PRNGKey(0)
    kx, kp = jax.random.split(key)

    B = 500  # deliberately not a multiple of the 256-lane tile (exercises padding)
    x = jax.random.normal(kx, (B, IN_DIM), jnp.float32)
    params = init_params(kp)

    out = neural_network_forward(x, params, tile_b=256)
    out = jax.block_until_ready(out)

    ref = reference_forward(x, params)
    assert out.shape == (B, OUT_DIM), out.shape
    assert jnp.allclose(out, ref, atol=2e-2, rtol=2e-2), (
        "mismatch vs reference: max abs err = "
        f"{jnp.max(jnp.abs(out - ref))}"
    )

    print("KERNEL_OK")
</pallas_src>

<mosaic_0001>
module attributes {stable_mosaic.version = 11 : i64} {
  func.func @mlp_kernel(%arg0: i32, %arg1: memref<18x256xbf16, #tpu.memory_space<vmem>>, %arg2: memref<64x18xbf16, #tpu.memory_space<vmem>>, %arg3: memref<64x1xf32, #tpu.memory_space<vmem>>, %arg4: memref<64x64xbf16, #tpu.memory_space<vmem>>, %arg5: memref<64x1xf32, #tpu.memory_space<vmem>>, %arg6: memref<4x64xbf16, #tpu.memory_space<vmem>>, %arg7: memref<4x1xf32, #tpu.memory_space<vmem>>, %arg8: memref<4x256xf32, #tpu.memory_space<vmem>>) attributes {dimension_semantics = [#tpu.dimension_semantics<parallel>], iteration_bounds = array<i64: 2>, scalar_prefetch = 0 : i64, scratch_operands = 0 : i64, tpu.core_type = #tpu.core_type<tc>, window_params = [{transform_indices = @transform_0, window_bounds = array<i64: 18, 256>}, {pipeline_mode = #tpu.pipeline_mode<synchronous>, transform_indices = @transform_1, window_bounds = array<i64: 64, 18>}, {pipeline_mode = #tpu.pipeline_mode<synchronous>, transform_indices = @transform_2, window_bounds = array<i64: 64, 1>}, {pipeline_mode = #tpu.pipeline_mode<synchronous>, transform_indices = @transform_3, window_bounds = array<i64: 64, 64>}, {pipeline_mode = #tpu.pipeline_mode<synchronous>, transform_indices = @transform_4, window_bounds = array<i64: 64, 1>}, {pipeline_mode = #tpu.pipeline_mode<synchronous>, transform_indices = @transform_5, window_bounds = array<i64: 4, 64>}, {pipeline_mode = #tpu.pipeline_mode<synchronous>, transform_indices = @transform_6, window_bounds = array<i64: 4, 1>}, {transform_indices = @transform_7, window_bounds = array<i64: 4, 256>}]} {
    %c0 = arith.constant 0 : index
    %c0_0 = arith.constant 0 : index
    %0 = vector.load %arg1[%c0, %c0_0] : memref<18x256xbf16, #tpu.memory_space<vmem>>, vector<18x256xbf16>
    %c0_1 = arith.constant 0 : index
    %c0_2 = arith.constant 0 : index
    %1 = vector.load %arg2[%c0_1, %c0_2] : memref<64x18xbf16, #tpu.memory_space<vmem>>, vector<64x18xbf16>
    %cst = arith.constant dense<0.000000e+00> : vector<64x256xf32>
    %2 = tpu.matmul %1, %0, %cst {dimension_numbers = #tpu.dot_dimension_numbers<[1], [0], [0], [1], [0, 0, 1, 1], [], []>} : vector<64x18xbf16>, vector<18x256xbf16>, vector<64x256xf32> -> vector<64x256xf32>
    %c0_3 = arith.constant 0 : index
    %c0_4 = arith.constant 0 : index
    %3 = vector.load %arg3[%c0_3, %c0_4] : memref<64x1xf32, #tpu.memory_space<vmem>>, vector<64x1xf32>
    %4 = vector.broadcast %3 : vector<64x1xf32> to vector<64x256xf32>
    %5 = arith.addf %2, %4 : vector<64x256xf32>
    %cst_5 = arith.constant 0.000000e+00 : f32
    %6 = vector.broadcast %cst_5 : f32 to vector<64x256xf32>
    %7 = arith.maximumf %5, %6 : vector<64x256xf32>
    %c0_6 = arith.constant 0 : index
    %c0_7 = arith.constant 0 : index
    %8 = vector.load %arg4[%c0_6, %c0_7] : memref<64x64xbf16, #tpu.memory_space<vmem>>, vector<64x64xbf16>
    %9 = arith.truncf %7 : vector<64x256xf32> to vector<64x256xbf16>
    %cst_8 = arith.constant dense<0.000000e+00> : vector<64x256xf32>
    %10 = tpu.matmul %8, %9, %cst_8 {dimension_numbers = #tpu.dot_dimension_numbers<[1], [0], [0], [1], [0, 0, 1, 1], [], []>} : vector<64x64xbf16>, vector<64x256xbf16>, vector<64x256xf32> -> vector<64x256xf32>
    %c0_9 = arith.constant 0 : index
    %c0_10 = arith.constant 0 : index
    %11 = vector.load %arg5[%c0_9, %c0_10] : memref<64x1xf32, #tpu.memory_space<vmem>>, vector<64x1xf32>
    %12 = vector.broadcast %11 : vector<64x1xf32> to vector<64x256xf32>
    %13 = arith.addf %10, %12 : vector<64x256xf32>
    %cst_11 = arith.constant 0.000000e+00 : f32
    %14 = vector.broadcast %cst_11 : f32 to vector<64x256xf32>
    %15 = arith.maximumf %13, %14 : vector<64x256xf32>
    %c0_12 = arith.constant 0 : index
    %c0_13 = arith.constant 0 : index
    %16 = vector.load %arg6[%c0_12, %c0_13] : memref<4x64xbf16, #tpu.memory_space<vmem>>, vector<4x64xbf16>
    %17 = arith.truncf %15 : vector<64x256xf32> to vector<64x256xbf16>
    %cst_14 = arith.constant dense<0.000000e+00> : vector<4x256xf32>
    %18 = tpu.matmul %16, %17, %cst_14 {dimension_numbers = #tpu.dot_dimension_numbers<[1], [0], [0], [1], [0, 0, 1, 1], [], []>} : vector<4x64xbf16>, vector<64x256xbf16>, vector<4x256xf32> -> vector<4x256xf32>
    %c0_15 = arith.constant 0 : index
    %c0_16 = arith.constant 0 : index
    %19 = vector.load %arg7[%c0_15, %c0_16] : memref<4x1xf32, #tpu.memory_space<vmem>>, vector<4x1xf32>
    %20 = vector.broadcast %19 : vector<4x1xf32> to vector<4x256xf32>
    %21 = arith.addf %18, %20 : vector<4x256xf32>
    %c0_17 = arith.constant 0 : index
    %c0_18 = arith.constant 0 : index
    %22 = vector.load %arg8[%c0_17, %c0_18] : memref<4x256xf32, #tpu.memory_space<vmem>>, vector<4x256xf32>
    tpu.vector_store %arg8[%c0_17, %c0_18], %21 {strides = array<i32>} : memref<4x256xf32, #tpu.memory_space<vmem>>, vector<4x256xf32>,
    return
  }
  func.func @transform_0(%arg0: i32) -> (i32, i32) {
    %c0_i32 = arith.constant 0 : i32
    %c0_i32_0 = arith.constant 0 : i32
    return %c0_i32, %arg0 : i32, i32
  }
  func.func @transform_1(%arg0: i32) -> (i32, i32) {
    %c0_i32 = arith.constant 0 : i32
    %c0_i32_0 = arith.constant 0 : i32
    %c0_i32_1 = arith.constant 0 : i32
    return %c0_i32, %c0_i32_0 : i32, i32
  }
  func.func @transform_2(%arg0: i32) -> (i32, i32) {
    %c0_i32 = arith.constant 0 : i32
    %c0_i32_0 = arith.constant 0 : i32
    %c0_i32_1 = arith.constant 0 : i32
    return %c0_i32, %c0_i32_0 : i32, i32
  }
  func.func @transform_3(%arg0: i32) -> (i32, i32) {
    %c0_i32 = arith.constant 0 : i32
    %c0_i32_0 = arith.constant 0 : i32
    %c0_i32_1 = arith.constant 0 : i32
    return %c0_i32, %c0_i32_0 : i32, i32
  }
  func.func @transform_4(%arg0: i32) -> (i32, i32) {
    %c0_i32 = arith.constant 0 : i32
    %c0_i32_0 = arith.constant 0 : i32
    %c0_i32_1 = arith.constant 0 : i32
    return %c0_i32, %c0_i32_0 : i32, i32
  }
  func.func @transform_5(%arg0: i32) -> (i32, i32) {
    %c0_i32 = arith.constant 0 : i32
    %c0_i32_0 = arith.constant 0 : i32
    %c0_i32_1 = arith.constant 0 : i32
    return %c0_i32, %c0_i32_0 : i32, i32
  }
  func.func @transform_6(%arg0: i32) -> (i32, i32) {
    %c0_i32 = arith.constant 0 : i32
    %c0_i32_0 = arith.constant 0 : i32
    %c0_i32_1 = arith.constant 0 : i32
    return %c0_i32, %c0_i32_0 : i32, i32
  }
  func.func @transform_7(%arg0: i32) -> (i32, i32) {
    %c0_i32 = arith.constant 0 : i32
    %c0_i32_0 = arith.constant 0 : i32
    return %c0_i32, %arg0 : i32, i32
  }
}

</mosaic_0001>

<llo_original>
// kernel: neural_network_forward.1
$region0: #{neural_network_forward.1}
  #allocation0 [shape = 'u32[]', space=smem, size = 0x4, offset = 0x4, fixed_abs, tag = 'smem constant byte address 0x4 - core index']
  #allocation1 [shape = 'u32[72,128]{1,0:T(1,128)}', space=vmem, size = 0x9000, scoped, tag = 'internal scratch']
  %s0 = inlined_call_operand.vmem [shape: bf16[18,512], index: 0, kind: input, shape index: {}]
  %s1 = inlined_call_operand.vmem [shape: bf16[64,18], index: 1, kind: input, shape index: {}]
  %s2 = inlined_call_operand.vmem [shape: f32[64,1], index: 2, kind: input, shape index: {}]
  %s3 = inlined_call_operand.vmem [shape: bf16[64,64], index: 3, kind: input, shape index: {}]
  %s4 = inlined_call_operand.vmem [shape: f32[64,1], index: 4, kind: input, shape index: {}]
  %s5 = inlined_call_operand.vmem [shape: bf16[4,64], index: 5, kind: input, shape index: {}]
  %s6 = inlined_call_operand.vmem [shape: f32[4,1], index: 6, kind: input, shape index: {}]
  %s7 = inlined_call_operand.vmem [shape: f32[4,512], index: 7, kind: output, shape index: {}]
  %s8 = sld [smem:[#allocation0]]
  $region99: #{neural_network_forward.1} parent=0
    _
  %s10 = ssub.s32 1, %s8
  %s11 = scalar_select 0, %s10, %s8
  $region1: #{neural_network_forward.1} parent=0
    #allocation2 [shape = 'u8[24576]{0}', space=vmem, size = 0x6000, scoped, tag = 'input window, operand 0']
    loop: start=0, step=1, limit=4
    $region2: #{neural_network_forward.1} parent=1 // loop_pre_header
      _
    $region3: #{neural_network_forward.1} parent=1 // loop_header
      %s13 = sphi 0, %s17
      %p14 = scmp.ge.s32.totalorder %s13, 4
      %s23 = sphi 0, %s25
      %s26 = sphi 0, %s23
      %s27 = sphi 0, %s26
      %s43 = sphi 0, %s27
      %s47 = sphi 0, %s47
      %s49 = sphi 0, %s47
      %s50 = sphi 0, %s49
      %s64 = sphi 0, %s50
      %s68 = sphi 0, %s68
      %s70 = sphi 0, %s68
      %s71 = sphi 0, %s70
      %s85 = sphi 0, %s71
      %s89 = sphi 0, %s89
      %s91 = sphi 0, %s89
      %s92 = sphi 0, %s91
      %s106 = sphi 0, %s92
      %s110 = sphi 0, %s110
      %s112 = sphi 0, %s110
      %s113 = sphi 0, %s112
      %s127 = sphi 0, %s113
      %s131 = sphi 0, %s131
      %s133 = sphi 0, %s131
      %s134 = sphi 0, %s133
      %s148 = sphi 0, %s134
      %s152 = sphi 0, %s152
      %s154 = sphi 0, %s152
      %s155 = sphi 0, %s154
      %s169 = sphi 0, %s155
      %s175 = sphi 0, %s177
      %s178 = sphi 0, %s175
      %s179 = sphi 0, %s178
      %s195 = sphi 0, %s179
    $region4: #{neural_network_forward.1} parent=1 // loop_header_branch
      %16 = sbr.rel (%p14) target = $region8
    $region5: #{neural_network_forward.1} parent=1 // loop_body
      %s18 = ssub.s32 %s13, 1
      %s19 = ssub.s32 %s13, 2
      %s20 = sadd.s32 %s13, 1
      %s21 = ssub.s32 %s13, %s20
      %p22 = scmp.eq.s32.totalorder %s21, 0
      %s24 = sadd.s32 %s23, 1
      %s25 = scalar_select %p22, %s23, %s24
      %p28 = pneg %p22
      %p29 = scmp.eq.s32.totalorder %s13, 1
      %p30 = por %p28, %p29
      %p31 = scmp.ne.s32.totalorder %s23, %s26
      %p32 = scmp.eq.s32.totalorder %s13, 0
      %p33 = por %p31, %p32
      %p34 = scmp.ne.s32.totalorder %s23, %s26
      %p35 = scmp.eq.s32.totalorder %s18, 1
      %p36 = por %p34, %p35
      %p37 = scmp.ne.s32.totalorder %s26, %s27
      %p38 = scmp.eq.s32.totalorder %s18, 0
      %p39 = por %p37, %p38
      %p40 = scmp.ne.s32.totalorder %s26, %s27
      %p41 = scmp.eq.s32.totalorder %s19, 1
      %p42 = por %p40, %p41
      %p44 = scmp.ne.s32.totalorder %s27, %s43
      %p45 = scmp.eq.s32.totalorder %s19, 0
      %p46 = por %p44, %p45
      %s48 = sadd.s32 %s47, 1
      %p51 = scmp.eq.s32.totalorder %s13, 1
      %p52 = scmp.ne.s32.totalorder %s47, %s49
      %p53 = scmp.eq.s32.totalorder %s13, 0
      %p54 = por %p52, %p53
      %p55 = scmp.ne.s32.totalorder %s47, %s49
      %p56 = scmp.eq.s32.totalorder %s18, 1
      %p57 = por %p55, %p56
      %p58 = scmp.ne.s32.totalorder %s49, %s50
      %p59 = scmp.eq.s32.totalorder %s18, 0
      %p60 = por %p58, %p59
      %p61 = scmp.ne.s32.totalorder %s49, %s50
      %p62 = scmp.eq.s32.totalorder %s19, 1
      %p63 = por %p61, %p62
      %p65 = scmp.ne.s32.totalorder %s50, %s64
      %p66 = scmp.eq.s32.totalorder %s19, 0
      %p67 = por %p65, %p66
      %s69 = sadd.s32 %s68, 1
      %p72 = scmp.eq.s32.totalorder %s13, 1
      %p73 = scmp.ne.s32.totalorder %s68, %s70
      %p74 = scmp.eq.s32.totalorder %s13, 0
      %p75 = por %p73, %p74
      %p76 = scmp.ne.s32.totalorder %s68, %s70
      %p77 = scmp.eq.s32.totalorder %s18, 1
      %p78 = por %p76, %p77
      %p79 = scmp.ne.s32.totalorder %s70, %s71
      %p80 = scmp.eq.s32.totalorder %s18, 0
      %p81 = por %p79, %p80
      %p82 = scmp.ne.s32.totalorder %s70, %s71
      %p83 = scmp.eq.s32.totalorder %s19, 1
      %p84 = por %p82, %p83
      %p86 = scmp.ne.s32.totalorder %s71, %s85
      %p87 = scmp.eq.s32.totalorder %s19, 0
      %p88 = por %p86, %p87
      %s90 = sadd.s32 %s89, 1
      %p93 = scmp.eq.s32.totalorder %s13, 1
      %p94 = scmp.ne.s32.totalorder %s89, %s91
      %p95 = scmp.eq.s32.totalorder %s13, 0
      %p96 = por %p94, %p95
      %p97 = scmp.ne.s32.totalorder %s89, %s91
      %p98 = scmp.eq.s32.totalorder %s18, 1
      %p99 = por %p97, %p98
      %p100 = scmp.ne.s32.totalorder %s91, %s92
      %p101 = scmp.eq.s32.totalorder %s18, 0
      %p102 = por %p100, %p101
      %p103 = scmp.ne.s32.totalorder %s91, %s92
      %p104 = scmp.eq.s32.totalorder %s19, 1
      %p105 = por %p103, %p104
      %p107 = scmp.ne.s32.totalorder %s92, %s106
      %p108 = scmp.eq.s32.totalorder %s19, 0
      %p109 = por %p107, %p108
      %s111 = sadd.s32 %s110, 1
      %p114 = scmp.eq.s32.totalorder %s13, 1
      %p115 = scmp.ne.s32.totalorder %s110, %s112
      %p116 = scmp.eq.s32.totalorder %s13, 0
      %p117 = por %p115, %p116
      %p118 = scmp.ne.s32.totalorder %s110, %s112
      %p119 = scmp.eq.s32.totalorder %s18, 1
      %p120 = por %p118, %p119
      %p121 = scmp.ne.s32.totalorder %s112, %s113
      %p122 = scmp.eq.s32.totalorder %s18, 0
      %p123 = por %p121, %p122
      %p124 = scmp.ne.s32.totalorder %s112, %s113
      %p125 = scmp.eq.s32.totalorder %s19, 1
      %p126 = por %p124, %p125
      %p128 = scmp.ne.s32.totalorder %s113, %s127
      %p129 = scmp.eq.s32.totalorder %s19, 0
      %p130 = por %p128, %p129
      %s132 = sadd.s32 %s131, 1
      %p135 = scmp.eq.s32.totalorder %s13, 1
      %p136 = scmp.ne.s32.totalorder %s131, %s133
      %p137 = scmp.eq.s32.totalorder %s13, 0
      %p138 = por %p136, %p137
      %p139 = scmp.ne.s32.totalorder %s131, %s133
      %p140 = scmp.eq.s32.totalorder %s18, 1
      %p141 = por %p139, %p140
      %p142 = scmp.ne.s32.totalorder %s133, %s134
      %p143 = scmp.eq.s32.totalorder %s18, 0
      %p144 = por %p142, %p143
      %p145 = scmp.ne.s32.totalorder %s133, %s134
      %p146 = scmp.eq.s32.totalorder %s19, 1
      %p147 = por %p145, %p146
      %p149 = scmp.ne.s32.totalorder %s134, %s148
      %p150 = scmp.eq.s32.totalorder %s19, 0
      %p151 = por %p149, %p150
      %s153 = sadd.s32 %s152, 1
      %p156 = scmp.eq.s32.totalorder %s13, 1
      %p157 = scmp.ne.s32.totalorder %s152, %s154
      %p158 = scmp.eq.s32.totalorder %s13, 0
      %p159 = por %p157, %p158
      %p160 = scmp.ne.s32.totalorder %s152, %s154
      %p161 = scmp.eq.s32.totalorder %s18, 1
      %p162 = por %p160, %p161
      %p163 = scmp.ne.s32.totalorder %s154, %s155
      %p164 = scmp.eq.s32.totalorder %s18, 0
      %p165 = por %p163, %p164
      %p166 = scmp.ne.s32.totalorder %s154, %s155
      %p167 = scmp.eq.s32.totalorder %s19, 1
      %p168 = por %p166, %p167
      %p170 = scmp.ne.s32.totalorder %s155, %s169
      %p171 = scmp.eq.s32.totalorder %s19, 0
      %p172 = por %p170, %p171
      %s173 = ssub.s32 %s13, %s20
      %p174 = scmp.eq.s32.totalorder %s173, 0
      %s176 = sadd.s32 %s175, 1
      %s177 = scalar_select %p174, %s175, %s176
      %p180 = pneg %p174
      %p181 = scmp.eq.s32.totalorder %s13, 1
      %p182 = por %p180, %p181
      %p183 = scmp.ne.s32.totalorder %s175, %s178
      %p184 = scmp.eq.s32.totalorder %s13, 0
      %p185 = por %p183, %p184
      %p186 = scmp.ne.s32.totalorder %s175, %s178
      %p187 = scmp.eq.s32.totalorder %s18, 1
      %p188 = por %p186, %p187
      %p189 = scmp.ne.s32.totalorder %s178, %s179
      %p190 = scmp.eq.s32.totalorder %s18, 0
      %p191 = por %p189, %p190
      %p192 = scmp.ne.s32.totalorder %s178, %s179
      %p193 = scmp.eq.s32.totalorder %s19, 1
      %p194 = por %p192, %p193
      %p196 = scmp.ne.s32.totalorder %s179, %s195
      %p197 = scmp.eq.s32.totalorder %s19, 0
      %p198 = por %p196, %p197
      %p199 = scmp.le.s32.totalorder 1, %s13
      %p200 = scmp.lt.s32.totalorder %s13, 3
      %p201 = pnand %p199, %p200
      %p202 = pneg %p201
      // Predicated region
      $region9: #{neural_network_forward.1} parent=5 // pred_check
        _
      $region10: #{neural_network_forward.1} parent=5 // pred_check_branch
        %204 = sbr.rel (%p201) target = $region12
      $region11: #{neural_network_forward.1} parent=5 // pred_region
        %s205 = ssub.s32 %s13, 1
        // Predicated region
        $region13: #{neural_network_forward.1} parent=11 // pred_check
          %p206 = pneg %p60
        $region14: #{neural_network_forward.1} parent=11 // pred_check_branch
          %208 = sbr.rel (%p206) target = $region16
        $region15: #{neural_network_forward.1} parent=11 // pred_region
          _
        $region16: #{neural_network_forward.1} parent=11 // pred_fallthru
          _
        // Predicated region
        $region17: #{neural_network_forward.1} parent=11 // pred_check
          %p209 = pneg %p81
        $region18: #{neural_network_forward.1} parent=11 // pred_check_branch
          %211 = sbr.rel (%p209) target = $region20
        $region19: #{neural_network_forward.1} parent=11 // pred_region
          _
        $region20: #{neural_network_forward.1} parent=11 // pred_fallthru
          _
        // Predicated region
        $region21: #{neural_network_forward.1} parent=11 // pred_check
          %p212 = pneg %p102
        $region22: #{neural_network_forward.1} parent=11 // pred_check_branch
          %214 = sbr.rel (%p212) target = $region24
        $region23: #{neural_network_forward.1} parent=11 // pred_region
          _
        $region24: #{neural_network_forward.1} parent=11 // pred_fallthru
          _
        // Predicated region
        $region25: #{neural_network_forward.1} parent=11 // pred_check
          %p215 = pneg %p123
        $region26: #{neural_network_forward.1} parent=11 // pred_check_branch
          %217 = sbr.rel (%p215) target = $region28
        $region27: #{neural_network_forward.1} parent=11 // pred_region
          _
        $region28: #{neural_network_forward.1} parent=11 // pred_fallthru
          _
        // Predicated region
        $region29: #{neural_network_forward.1} parent=11 // pred_check
          %p218 = pneg %p144
        $region30: #{neural_network_forward.1} parent=11 // pred_check_branch
          %220 = sbr.rel (%p218) target = $region32
        $region31: #{neural_network_forward.1} parent=11 // pred_region
          _
        $region32: #{neural_network_forward.1} parent=11 // pred_fallthru
          _
        // Predicated region
        $region33: #{neural_network_forward.1} parent=11 // pred_check
          %p221 = pneg %p165
        $region34: #{neural_network_forward.1} parent=11 // pred_check_branch
          %223 = sbr.rel (%p221) target = $region36
        $region35: #{neural_network_forward.1} parent=11 // pred_region
          _
        $region36: #{neural_network_forward.1} parent=11 // pred_fallthru
          _
      $region12: #{neural_network_forward.1} parent=5 // pred_fallthru
        _
      %p224 = scmp.lt.s32.totalorder %s13, 2
      // Predicated region
      $region37: #{neural_network_forward.1} parent=5 // pred_check
        %p225 = pneg %p224
      $region38: #{neural_network_forward.1} parent=5 // pred_check_branch
        %227 = sbr.rel (%p225) target = $region40
      $region39: #{neural_network_forward.1} parent=5 // pred_region
        // Predicated region
        $region41: #{neural_network_forward.1} parent=39 // pred_check
          %p228 = pneg %p33
        $region42: #{neural_network_forward.1} parent=39 // pred_check_branch
          %230 = sbr.rel (%p228) target = $region44
        $region43: #{neural_network_forward.1} parent=39 // pred_region
          %s231 = sand.u32 %s23, 1
          %s232 = sand.u32 %s23, 1
          %s233 = smul.addr %s232, 24
          %s234 = scalar_lea.vmem [#allocation2], %s233
          %s235 = smul.u32 2, %s13
          %s236 = smul.addr %s235, 4
          %s237 = scalar_lea.vmem %s0, %s236
          // Predicated region
          $region45: #{neural_network_forward.1} parent=43 // pred_check
            _
          $region46: #{neural_network_forward.1} parent=43 // pred_check_branch
            %239 = sbr.rel (0) target = $region48
          $region47: #{neural_network_forward.1} parent=43 // pred_region
            // Predicated region
            $region49: #{neural_network_forward.1} parent=47 // pred_check
              _
            $region50: #{neural_network_forward.1} parent=47 // pred_check_branch
              %241 = sbr.rel (0) target = $region52
            $region51: #{neural_network_forward.1} parent=47 // pred_region
              // Predicated region
              $region64: #{neural_network_forward.1} parent=51 // pred_check
                _
              $region65: #{neural_network_forward.1} parent=51 // pred_check_branch
                %261 = sbr.rel (0) target = $region67
              $region66: #{neural_network_forward.1} parent=51 // pred_region
                loop: start=0, step=1, limit=1
                $region68: #{neural_network_forward.1} parent=66 // loop_pre_header
                  _
                $region69: #{neural_network_forward.1} parent=66 // loop_header
                  %s263 = sphi 0, %s267
                  %p264 = scmp.ge.s32.totalorder %s263, 1
                  %s268 = sphi %s237, %s237
                  %s269 = sphi %s234, %s234
                $region70: #{neural_network_forward.1} parent=66 // loop_header_branch
                  %266 = sbr.rel (%p264) target = $region74
                $region71: #{neural_network_forward.1} parent=66 // loop_body
                  %v270 = vld [vmem:[%s268] sm:$0xff]
                  %271 = vst [vmem:[%s269] sm:$0xff] %v270
                  %v272 = vld [vmem:[%s268 + $0x10] sm:$0xff]
                  %273 = vst [vmem:[%s269 + $0x8] sm:$0xff] %v272
                  %v274 = vld [vmem:[%s268 + $0x20] sm:$0xff]
                  %275 = vst [vmem:[%s269 + $0x10] sm:$0xff] %v274
                $region72: #{neural_network_forward.1} parent=66 // loop_footer
                  %s267 = sadd.s32 1, %s263
                $region73: #{neural_network_forward.1} parent=66 // loop_footer_branch
                  %262 = sbr.rel target = $region69
                $region74: #{neural_network_forward.1} parent=66 // loop_exit
                  _
              $region67: #{neural_network_forward.1} parent=51 // pred_fallthru
                _
              // Predicated region
              $region75: #{neural_network_forward.1} parent=51 // pred_check
                _
              $region76: #{neural_network_forward.1} parent=51 // pred_check_branch
                %277 = sbr.rel target = $region78
              $region77: #{neural_network_forward.1} parent=51 // pred_region
                _
              $region78: #{neural_network_forward.1} parent=51 // pred_fallthru
                _
            $region52: #{neural_network_forward.1} parent=47 // pred_fallthru
              _
            // Predicated region
            $region53: #{neural_network_forward.1} parent=47 // pred_check
              _
            $region54: #{neural_network_forward.1} parent=47 // pred_check_branch
              %243 = sbr.rel target = $region56
            $region55: #{neural_network_forward.1} parent=47 // pred_region
              %s245 = ssub.s32 256, 1
              loop: start=0, step=1, limit=1
              $region57: #{neural_network_forward.1} parent=55 // loop_pre_header
                _
              $region58: #{neural_network_forward.1} parent=55 // loop_header
                %s247 = sphi 0, %s251
                %p248 = scmp.ge.s32.totalorder %s247, 1
                %s252 = sphi %s237, %s237
                %s253 = sphi %s234, %s234
              $region59: #{neural_network_forward.1} parent=55 // loop_header_branch
                %250 = sbr.rel (%p248) target = $region63
              $region60: #{neural_network_forward.1} parent=55 // loop_body
                %v254 = vld [vmem:[%s252] sm:%s245]
                %255 = vst [vmem:[%s253] sm:%s245] %v254
                %v256 = vld [vmem:[%s252 + $0x10] sm:%s245]
                %257 = vst [vmem:[%s253 + $0x8] sm:%s245] %v256
                %v258 = vld [vmem:[%s252 + $0x20] sm:%s245]
                %259 = vst [vmem:[%s253 + $0x10] sm:%s245] %v258
              $region61: #{neural_network_forward.1} parent=55 // loop_footer
                %s251 = sadd.s32 1, %s247
              $region62: #{neural_network_forward.1} parent=55 // loop_footer_branch
                %246 = sbr.rel target = $region58
              $region63: #{neural_network_forward.1} parent=55 // loop_exit
                _
            $region56: #{neural_network_forward.1} parent=47 // pred_fallthru
              _
          $region48: #{neural_network_forward.1} parent=43 // pred_fallthru
            _
          %278 = vnop
        $region44: #{neural_network_forward.1} parent=39 // pred_fallthru
          _
      $region40: #{neural_network_forward.1} parent=5 // pred_fallthru
        _
      %p279 = scmp.le.s32.totalorder 1, %s13
      %p280 = scmp.lt.s32.totalorder %s13, 3
      %p281 = pnand %p279, %p280
      %p282 = pneg %p281
      // Predicated region
      $region79: #{neural_network_forward.1} parent=5 // pred_check
        _
      $region80: #{neural_network_forward.1} parent=5 // pred_check_branch
        %284 = sbr.rel (%p281) target = $region82
      $region81: #{neural_network_forward.1} parent=5 // pred_region
        %s285 = ssub.s32 %s13, 1
        %s286 = sand.u32 %s26, 1
        %s287 = sand.u32 %s26, 1
        %s288 = smul.addr %s287, 24
        %s289 = scalar_lea.vmem [#allocation2], %s288
        // Predicated region
        $region83: #{neural_network_forward.1} parent=81 // pred_check
          %p290 = pneg %p39
        $region84: #{neural_network_forward.1} parent=81 // pred_check_branch
          %292 = sbr.rel (%p290) target = $region86
        $region85: #{neural_network_forward.1} parent=81 // pred_region
          _
        $region86: #{neural_network_forward.1} parent=81 // pred_fallthru
          _
        %s293 = sand.u32 %s26, 1
        %s294 = sand.u32 %s26, 1
        %s295 = smul.addr %s294, 24
        %s296 = scalar_lea.vmem [#allocation2], %s295
        %p297 = pneg %p39
        %p298 = pneg %p36
        %p299 = pneg %p60
        %p300 = pneg %p57
        %p301 = pneg %p81
        %p302 = pneg %p78
        %p303 = pneg %p102
        %p304 = pneg %p99
        %p305 = pneg %p123
        %p306 = pneg %p120
        %p307 = pneg %p144
        %p308 = pneg %p141
        %p309 = pneg %p165
        %p310 = pneg %p162
        %p311 = pneg %p191
        %p312 = pneg %p188
        %s313 = smul.u32 2, %s18
        %p314 = scmp.lt.s32.totalorder %s313, 3
        %s315 = scalar_select %p314, %s313, 3
        %s316 = smul.addr %s315, 4
        %s317 = scalar_lea.vmem %s7, %s316
        %s318 = smul.u32 2, %s18
        %s319 = smul.u32 2, %s18
        %p320 = scmp.lt.s32.totalorder %s319, 3
        %s321 = scalar_select %p320, %s319, 3
        %s322 = smul.addr %s321, 4
        %s323 = scalar_lea.vmem %s7, %s322
        %s324 = smul.u32 2, %s18
        %v326 = vld [vmem:[%s289] sm:$0xff]
        %v327 = vld [vmem:[%s289 + $0x8] sm:$0xff]
        %v328 = vld [vmem:[%s289 + $0x10] sm:$0x11]
        %v329 = vld [vmem:[%s1] sm:$0xf]
        %v330 = vld [vmem:[%s1 + $0x4] sm:$0xf]
        %v331 = vld [vmem:[%s1 + $0x8] sm:$0xf]
        %v332 = vld [vmem:[%s1 + $0xc] sm:$0xf]
        %v333 = vld [vmem:[%s1 + $0x10] sm:$0xf]
        %v334 = vld [vmem:[%s1 + $0x14] sm:$0xf]
        %v335 = vld [vmem:[%s1 + $0x18] sm:$0xf]
        %v336 = vld [vmem:[%s1 + $0x1c] sm:$0xf]
        %v337 = vld [vmem:[%s2] sm:$0xff]
        %v338 = vld [vmem:[%s2 + $0x8] sm:$0xff]
        %v339 = vld [vmem:[%s2 + $0x10] sm:$0xff]
        %v340 = vld [vmem:[%s2 + $0x18] sm:$0xff]
        %v341 = vld [vmem:[%s2 + $0x20] sm:$0xff]
        %v342 = vld [vmem:[%s2 + $0x28] sm:$0xff]
        %v343 = vld [vmem:[%s2 + $0x30] sm:$0xff]
        %v344 = vld [vmem:[%s2 + $0x38] sm:$0xff]
        %346 = vset.pattern.permute.xlu0 0
        %347 = vperm.xlu0 %346, %v337
        %v348 = vpop.permute.xlu0 %347
        %351 = vset.pattern.permute.xlu0 0
        %352 = vperm.xlu0 %351, %v338
        %v353 = vpop.permute.xlu0 %352
        %356 = vset.pattern.permute.xlu0 0
        %357 = vperm.xlu0 %356, %v339
        %v358 = vpop.permute.xlu0 %357
        %361 = vset.pattern.permute.xlu0 0
        %362 = vperm.xlu0 %361, %v340
        %v363 = vpop.permute.xlu0 %362
        %366 = vset.pattern.permute.xlu0 0
        %367 = vperm.xlu0 %366, %v341
        %v368 = vpop.permute.xlu0 %367
        %371 = vset.pattern.permute.xlu0 0
        %372 = vperm.xlu0 %371, %v342
        %v373 = vpop.permute.xlu0 %372
        %376 = vset.pattern.permute.xlu0 0
        %377 = vperm.xlu0 %376, %v343
        %v378 = vpop.permute.xlu0 %377
        %381 = vset.pattern.permute.xlu0 0
        %382 = vperm.xlu0 %381, %v344
        %v383 = vpop.permute.xlu0 %382
        %v393 = vunpack.c.l.b16 %v329
        %v394 = vunpack.c.l.b16 %v330
        %v395 = vunpack.c.l.b16 %v331
        %v396 = vunpack.c.l.b16 %v332
        %v397 = vunpack.c.l.b16 %v333
        %v398 = vunpack.c.l.b16 %v334
        %v399 = vunpack.c.l.b16 %v335
        %v400 = vunpack.c.l.b16 %v336
        %v401 = vpack.c.b16 %v394, %v393
        %v402 = vpack.c.b16 %v396, %v395
        %v403 = vpack.c.b16 %v398, %v397
        %v404 = vpack.c.b16 %v400, %v399
        %v408 = vunpack.c.l.b16 %v326
        %v409 = vunpack.c.h.b16 %v326
        %v410 = vunpack.c.l.b16 %v327
        %v411 = vunpack.c.h.b16 %v327
        %v412 = vunpack.c.l.b16 %v328
        %v413 = vunpack.c.h.b16 %v328
        %v414 = vpack.c.b16 %v410, %v408
        %v415 = vpack.c.b16 %v411, %v409
        %v416 = vpack.c.b16 %v412, %v412
        %v417 = vpack.c.b16 %v413, %v413
        %vm420 = vcmask 146432
        %v422 = vsel %vm420, %v401, 0
        %v425 = vsel %vm420, %v402, 0
        %v428 = vsel %vm420, %v403, 0
        %v431 = vsel %vm420, %v404, 0
        %vm433 = vcmask 1040384
        %v435 = vsel %vm433, %v416, 0
        %v438 = vsel %vm433, %v417, 0
        %440 = vmatpush.bf16.msra.mxu0 0
        %441 = vmatpush.bf16.msra.mxu0 0
        %442 = vmatpush.bf16.msra.mxu0 0
        %443 = vmatpush.bf16.msra.mxu0 0
        %444 = vmatpush.bf16.msra.mxu0 0
        %445 = vmatpush.bf16.msra.mxu0 0
        %446 = vmatpush.bf16.msra.mxu0 %v435
        %447 = vmatpush.bf16.msra.mxu0 %v414
        %448 = vmatmul.bf16.gmra.mxu0 %v422
        %v449 = vpop.f32.mrf.mxu0
        %v450 = vadd.f32 %v348, %v449
        %v451 = vpop.f32.mrf.mxu0
        %v452 = vadd.f32 %v353, %v451
        %453 = vmatmul.bf16.gmra.mxu0 %v425
        %v454 = vpop.f32.mrf.mxu0
        %v455 = vadd.f32 %v358, %v454
        %v456 = vpop.f32.mrf.mxu0
        %v457 = vadd.f32 %v363, %v456
        %458 = vmatmul.bf16.gmra.mxu0 %v428
        %v459 = vpop.f32.mrf.mxu0
        %v460 = vadd.f32 %v368, %v459
        %v461 = vpop.f32.mrf.mxu0
        %v462 = vadd.f32 %v373, %v461
        %463 = vmatmul.bf16.gmra.mxu0 %v431
        %v464 = vpop.f32.mrf.mxu0
        %v465 = vadd.f32 %v378, %v464
        %v466 = vpop.f32.mrf.mxu0
        %v467 = vadd.f32 %v383, %v466
        %468 = vdwg.mxu0
        %469 = vmatpush.bf16.msra.mxu0 0
        %470 = vmatpush.bf16.msra.mxu0 0
        %471 = vmatpush.bf16.msra.mxu0 0
        %472 = vmatpush.bf16.msra.mxu0 0
        %473 = vmatpush.bf16.msra.mxu0 0
        %474 = vmatpush.bf16.msra.mxu0 0
        %475 = vmatpush.bf16.msra.mxu0 %v438
        %476 = vmatpush.bf16.msra.mxu0 %v415
        %477 = vmatmul.bf16.gmra.mxu0 %v422
        %v478 = vpop.f32.mrf.mxu0
        %v479 = vadd.f32 %v348, %v478
        %v480 = vpop.f32.mrf.mxu0
        %v481 = vadd.f32 %v353, %v480
        %482 = vmatmul.bf16.gmra.mxu0 %v425
        %v483 = vpop.f32.mrf.mxu0
        %v484 = vadd.f32 %v358, %v483
        %v485 = vpop.f32.mrf.mxu0
        %v486 = vadd.f32 %v363, %v485
        %487 = vmatmul.bf16.gmra.mxu0 %v428
        %v488 = vpop.f32.mrf.mxu0
        %v489 = vadd.f32 %v368, %v488
        %v490 = vpop.f32.mrf.mxu0
        %v491 = vadd.f32 %v373, %v490
        %492 = vmatmul.bf16.gmra.mxu0 %v431
        %v493 = vpop.f32.mrf.mxu0
        %v494 = vadd.f32 %v378, %v493
        %v495 = vpop.f32.mrf.mxu0
        %v496 = vadd.f32 %v383, %v495
        %497 = vdwg.mxu0
        %v498 = vmax.f32 %v450, 0.0
        %v499 = vmax.f32 %v479, 0.0
        %v500 = vmax.f32 %v452, 0.0
        %v501 = vmax.f32 %v481, 0.0
        %v502 = vmax.f32 %v455, 0.0
        %v503 = vmax.f32 %v484, 0.0
        %v504 = vmax.f32 %v457, 0.0
        %v505 = vmax.f32 %v486, 0.0
        %v506 = vmax.f32 %v460, 0.0
        %v507 = vmax.f32 %v489, 0.0
        %v508 = vmax.f32 %v462, 0.0
        %v509 = vmax.f32 %v491, 0.0
        %v510 = vmax.f32 %v465, 0.0
        %v511 = vmax.f32 %v494, 0.0
        %v512 = vmax.f32 %v467, 0.0
        %v513 = vmax.f32 %v496, 0.0
        %v514 = vld [vmem:[%s3] sm:$0xf]
        %v515 = vld [vmem:[%s3 + $0x4] sm:$0xf]
        %v516 = vld [vmem:[%s3 + $0x8] sm:$0xf]
        %v517 = vld [vmem:[%s3 + $0xc] sm:$0xf]
        %v518 = vld [vmem:[%s3 + $0x10] sm:$0xf]
        %v519 = vld [vmem:[%s3 + $0x14] sm:$0xf]
        %v520 = vld [vmem:[%s3 + $0x18] sm:$0xf]
        %v521 = vld [vmem:[%s3 + $0x1c] sm:$0xf]
        %v522 = vpack.c.bf16 %v500, %v498
        %v523 = vpack.c.bf16 %v501, %v499
        %v524 = vpack.c.bf16 %v504, %v502
        %v525 = vpack.c.bf16 %v505, %v503
        %v526 = vpack.c.bf16 %v508, %v506
        %v527 = vpack.c.bf16 %v509, %v507
        %v528 = vpack.c.bf16 %v512, %v510
        %v529 = vpack.c.bf16 %v513, %v511
        %v530 = vld [vmem:[%s4] sm:$0xff]
        %v531 = vld [vmem:[%s4 + $0x8] sm:$0xff]
        %v532 = vld [vmem:[%s4 + $0x10] sm:$0xff]
        %v533 = vld [vmem:[%s4 + $0x18] sm:$0xff]
        %v534 = vld [vmem:[%s4 + $0x20] sm:$0xff]
        %v535 = vld [vmem:[%s4 + $0x28] sm:$0xff]
        %v536 = vld [vmem:[%s4 + $0x30] sm:$0xff]
        %v537 = vld [vmem:[%s4 + $0x38] sm:$0xff]
        %539 = vset.pattern.permute.xlu0 0
        %540 = vperm.xlu0 %539, %v530
        %v541 = vpop.permute.xlu0 %540
        %544 = vset.pattern.permute.xlu0 0
        %545 = vperm.xlu0 %544, %v531
        %v546 = vpop.permute.xlu0 %545
        %549 = vset.pattern.permute.xlu0 0
        %550 = vperm.xlu0 %549, %v532
        %v551 = vpop.permute.xlu0 %550
        %554 = vset.pattern.permute.xlu0 0
        %555 = vperm.xlu0 %554, %v533
        %v556 = vpop.permute.xlu0 %555
        %559 = vset.pattern.permute.xlu0 0
        %560 = vperm.xlu0 %559, %v534
        %v561 = vpop.permute.xlu0 %560
        %564 = vset.pattern.permute.xlu0 0
        %565 = vperm.xlu0 %564, %v535
        %v566 = vpop.permute.xlu0 %565
        %569 = vset.pattern.permute.xlu0 0
        %570 = vperm.xlu0 %569, %v536
        %v571 = vpop.permute.xlu0 %570
        %574 = vset.pattern.permute.xlu0 0
        %575 = vperm.xlu0 %574, %v537
        %v576 = vpop.permute.xlu0 %575
        %v586 = vunpack.c.l.b16 %v514
        %v587 = vunpack.c.l.b16 %v515
        %v588 = vunpack.c.l.b16 %v516
        %v589 = vunpack.c.l.b16 %v517
        %v590 = vunpack.c.l.b16 %v518
        %v591 = vunpack.c.l.b16 %v519
        %v592 = vunpack.c.l.b16 %v520
        %v593 = vunpack.c.l.b16 %v521
        %v594 = vpack.c.b16 %v587, %v586
        %v595 = vpack.c.b16 %v589, %v588
        %v596 = vpack.c.b16 %v591, %v590
        %v597 = vpack.c.b16 %v593, %v592
        %vm598 = vcmask 523264
        %v600 = vsel %vm598, %v594, 0
        %v603 = vsel %vm598, %v595, 0
        %v606 = vsel %vm598, %v596, 0
        %v609 = vsel %vm598, %v597, 0
        %611 = vmatpush.bf16.msra.mxu0 0
        %612 = vmatpush.bf16.msra.mxu0 0
        %613 = vmatpush.bf16.msra.mxu0 0
        %614 = vmatpush.bf16.msra.mxu0 0
        %615 = vmatpush.bf16.msra.mxu0 %v528
        %616 = vmatpush.bf16.msra.mxu0 %v526
        %617 = vmatpush.bf16.msra.mxu0 %v524
        %618 = vmatpush.bf16.msra.mxu0 %v522
        %619 = vmatmul.bf16.gmra.mxu0 %v600
        %v620 = vpop.f32.mrf.mxu0
        %v621 = vadd.f32 %v541, %v620
        %v622 = vpop.f32.mrf.mxu0
        %v623 = vadd.f32 %v546, %v622
        %624 = vmatmul.bf16.gmra.mxu0 %v603
        %v625 = vpop.f32.mrf.mxu0
        %v626 = vadd.f32 %v551, %v625
        %v627 = vpop.f32.mrf.mxu0
        %v628 = vadd.f32 %v556, %v627
        %629 = vmatmul.bf16.gmra.mxu0 %v606
        %v630 = vpop.f32.mrf.mxu0
        %v631 = vadd.f32 %v561, %v630
        %v632 = vpop.f32.mrf.mxu0
        %v633 = vadd.f32 %v566, %v632
        %634 = vmatmul.bf16.gmra.mxu0 %v609
        %v635 = vpop.f32.mrf.mxu0
        %v636 = vadd.f32 %v571, %v635
        %v637 = vpop.f32.mrf.mxu0
        %v638 = vadd.f32 %v576, %v637
        %639 = vdwg.mxu0
        %640 = vmatpush.bf16.msra.mxu0 0
        %641 = vmatpush.bf16.msra.mxu0 0
        %642 = vmatpush.bf16.msra.mxu0 0
        %643 = vmatpush.bf16.msra.mxu0 0
        %644 = vmatpush.bf16.msra.mxu0 %v529
        %645 = vmatpush.bf16.msra.mxu0 %v527
        %646 = vmatpush.bf16.msra.mxu0 %v525
        %647 = vmatpush.bf16.msra.mxu0 %v523
        %648 = vmatmul.bf16.gmra.mxu0 %v600
        %v649 = vpop.f32.mrf.mxu0
        %v650 = vadd.f32 %v541, %v649
        %v651 = vpop.f32.mrf.mxu0
        %v652 = vadd.f32 %v546, %v651
        %653 = vmatmul.bf16.gmra.mxu0 %v603
        %v654 = vpop.f32.mrf.mxu0
        %v655 = vadd.f32 %v551, %v654
        %v656 = vpop.f32.mrf.mxu0
        %v657 = vadd.f32 %v556, %v656
        %658 = vmatmul.bf16.gmra.mxu0 %v606
        %v659 = vpop.f32.mrf.mxu0
        %v660 = vadd.f32 %v561, %v659
        %v661 = vpop.f32.mrf.mxu0
        %v662 = vadd.f32 %v566, %v661
        %663 = vmatmul.bf16.gmra.mxu0 %v609
        %v664 = vpop.f32.mrf.mxu0
        %v665 = vadd.f32 %v571, %v664
        %v666 = vpop.f32.mrf.mxu0
        %v667 = vadd.f32 %v576, %v666
        %668 = vdwg.mxu0
        %v669 = vmax.f32 %v621, 0.0
        %v670 = vmax.f32 %v650, 0.0
        %v671 = vmax.f32 %v623, 0.0
        %v672 = vmax.f32 %v652, 0.0
        %v673 = vmax.f32 %v626, 0.0
        %v674 = vmax.f32 %v655, 0.0
        %v675 = vmax.f32 %v628, 0.0
        %v676 = vmax.f32 %v657, 0.0
        %v677 = vmax.f32 %v631, 0.0
        %v678 = vmax.f32 %v660, 0.0
        %v679 = vmax.f32 %v633, 0.0
        %v680 = vmax.f32 %v662, 0.0
        %v681 = vmax.f32 %v636, 0.0
        %v682 = vmax.f32 %v665, 0.0
        %v683 = vmax.f32 %v638, 0.0
        %v684 = vmax.f32 %v667, 0.0
        %v685 = vld [vmem:[%s5] sm:$0x3]
        %v686 = vpack.c.bf16 %v671, %v669
        %v687 = vpack.c.bf16 %v672, %v670
        %v688 = vpack.c.bf16 %v675, %v673
        %v689 = vpack.c.bf16 %v676, %v674
        %v690 = vpack.c.bf16 %v679, %v677
        %v691 = vpack.c.bf16 %v680, %v678
        %v692 = vpack.c.bf16 %v683, %v681
        %v693 = vpack.c.bf16 %v684, %v682
        %v694 = vld [vmem:[%s6] sm:$0xf]
        %696 = vset.pattern.permute.xlu0 0
        %697 = vperm.xlu0 %696, %v694
        %v698 = vpop.permute.xlu0 %697
        %v701 = vsel %vm598, %v685, 0
        %703 = vmatpush.bf16.msra.mxu0 0
        %704 = vmatpush.bf16.msra.mxu0 0
        %705 = vmatpush.bf16.msra.mxu0 0
        %706 = vmatpush.bf16.msra.mxu0 0
        %707 = vmatpush.bf16.msra.mxu0 %v692
        %708 = vmatpush.bf16.msra.mxu0 %v690
        %709 = vmatpush.bf16.msra.mxu0 %v688
        %710 = vmatpush.bf16.msra.mxu0 %v686
        %711 = vmatmul.bf16.gmra.mxu0 %v701
        %v712 = vpop.f32.mrf.mxu0
        %v713 = vadd.f32 %v698, %v712
        %v714 = vpop.f32.mrf.mxu0
        %715 = vdwg.mxu0
        %716 = vmatpush.bf16.msra.mxu0 0
        %717 = vmatpush.bf16.msra.mxu0 0
        %718 = vmatpush.bf16.msra.mxu0 0
        %719 = vmatpush.bf16.msra.mxu0 0
        %720 = vmatpush.bf16.msra.mxu0 %v693
        %721 = vmatpush.bf16.msra.mxu0 %v691
        %722 = vmatpush.bf16.msra.mxu0 %v689
        %723 = vmatpush.bf16.msra.mxu0 %v687
        %724 = vmatmul.bf16.gmra.mxu0 %v701
        %v725 = vpop.f32.mrf.mxu0
        %v726 = vadd.f32 %v698, %v725
        %v727 = vpop.f32.mrf.mxu0
        %728 = vdwg.mxu0
        %v731 = vrot.slane %v726, 4
        %vm732 = vcmask 1043456
        %v733 = vsel %vm732, %v713, %v731
        %735 = vst [vmem:[%s323] sm:$0xff] %v733
        %s736 = smul.u32 2, %s18
        %p737 = scmp.lt.s32.totalorder %s736, 3
        %s738 = scalar_select %p737, %s736, 3
        %s739 = smul.addr %s738, 4
        %s740 = scalar_lea.vmem %s7, %s739
        // Predicated region
        $region87: #{neural_network_forward.1} parent=81 // pred_check
          %p741 = pneg %p188
        $region88: #{neural_network_forward.1} parent=81 // pred_check_branch
          %743 = sbr.rel (%p741) target = $region90
        $region89: #{neural_network_forward.1} parent=81 // pred_region
          %s744 = smul.u32 2, %s18
        $region90: #{neural_network_forward.1} parent=81 // pred_fallthru
          _
      $region82: #{neural_network_forward.1} parent=5 // pred_fallthru
        _
      %p745 = scmp.le.s32.totalorder 2, %s13
      // Predicated region
      $region91: #{neural_network_forward.1} parent=5 // pred_check
        %p746 = pneg %p745
      $region92: #{neural_network_forward.1} parent=5 // pred_check_branch
        %748 = sbr.rel (%p746) target = $region94
      $region93: #{neural_network_forward.1} parent=5 // pred_region
        %s749 = ssub.s32 %s13, 2
        // Predicated region
        $region95: #{neural_network_forward.1} parent=93 // pred_check
          %p750 = pneg %p194
        $region96: #{neural_network_forward.1} parent=93 // pred_check_branch
          %752 = sbr.rel (%p750) target = $region98
        $region97: #{neural_network_forward.1} parent=93 // pred_region
          %s753 = smul.u32 2, %s19
          %p754 = scmp.lt.s32.totalorder %s753, 3
          %s755 = scalar_select %p754, %s753, 3
          %s756 = smul.addr %s755, 4
          %s757 = scalar_lea.vmem %s7, %s756
        $region98: #{neural_network_forward.1} parent=93 // pred_fallthru
          _
      $region94: #{neural_network_forward.1} parent=5 // pred_fallthru
        _
    $region6: #{neural_network_forward.1} parent=1 // loop_footer
      %s17 = sadd.s32 1, %s13
    $region7: #{neural_network_forward.1} parent=1 // loop_footer_branch
      %12 = sbr.rel target = $region3
    $region8: #{neural_network_forward.1} parent=1 // loop_exit
      _

</llo_original>
